<compile_context>
chip_gen: v6e
topology: v6e:2x2x1
jax: 0.10.0
libtpu: 0.0.40
codegen_flags: <defaults>
</compile_context>

<pallas_src>
from functools import partial

import jax
import jax.numpy as jnp
from jax import lax
from jax.experimental import pallas as pl
from jax.experimental.pallas import tpu as pltpu


def _round_up(x: int, m: int) -> int:
    return (x + m - 1) // m * m


def _nll_loss_kernel(logp_ref, tgt_ref, out_ref, *, inv_n):
    # logp_ref: (TILE_N, C) log-probabilities (native dtype), tgt_ref: (TILE_N, 1) int32.
    i = pl.program_id(0)

    @pl.when(i == 0)
    def _init():
        out_ref[...] = jnp.zeros_like(out_ref)

    logp = logp_ref[...].astype(jnp.float32)     # cast in-kernel, accumulate in f32
    tgt = tgt_ref[...]                           # padded rows carry -1 -> never match
    tn, c = logp.shape

    # Gather-free one-hot select of the target class per row (VPU-friendly),
    # followed by a single full-tile reduce.
    class_ids = lax.broadcasted_iota(jnp.int32, (tn, c), 1)
    picked = jnp.where(class_ids == tgt, logp, 0.0)
    out_ref[...] += jnp.sum(picked, keepdims=True)

    @pl.when(i == pl.num_programs(0) - 1)
    def _finalize():
        # reduction='mean': negate and divide by the true batch size, once.
        out_ref[...] = out_ref[...] * (-inv_n)


def my_loss(outputs, targets, *, tile_n=512, vmem_budget_bytes=12 * 1024 * 1024):
    """Pallas equivalent of MyLoss.forward(outputs, targets)."""
    logp = outputs[1]                     # NOTE: no wrapper cast; kernel casts per tile
    n, c = logp.shape
    itemsize = jnp.dtype(logp.dtype).itemsize

    # Pick the largest batch tile that keeps double-buffered logp tiles within a
    # conservative scoped-VMEM budget (safe across v5e/v6e/v7x defaults).
    max_rows = max(8, (vmem_budget_bytes // (2 * c * itemsize)) // 8 * 8)
    tile_n = int(min(tile_n, max_rows, _round_up(n, 8)))
    n_pad = _round_up(n, tile_n)

    tgt = targets.astype(jnp.int32).reshape(n, 1)
    if n_pad != n:
        logp = jnp.pad(logp, ((0, n_pad - n), (0, 0)))
        tgt = jnp.pad(tgt, ((0, n_pad - n), (0, 0)), constant_values=-1)

    kernel = partial(_nll_loss_kernel, inv_n=float(1.0 / n))

    out = pl.pallas_call(
        kernel,
        out_shape=jax.ShapeDtypeStruct((1, 1), jnp.float32),
        grid_spec=pltpu.PrefetchScalarGridSpec(
            num_scalar_prefetch=0,
            grid=(n_pad // tile_n,),
            in_specs=[
                pl.BlockSpec((tile_n, c), lambda i: (i, 0)),
                pl.BlockSpec((tile_n, 1), lambda i: (i, 0)),
            ],
            out_specs=pl.BlockSpec((1, 1), lambda i: (0, 0)),
        ),
        compiler_params=pltpu.CompilerParams(
            dimension_semantics=("arbitrary",),   # batch axis is the reduction axis
        ),
    )(logp, tgt)
    return out[0, 0]


if __name__ == "__main__":
    key = jax.random.PRNGKey(0)
    k_feat, k_logit, k_tgt = jax.random.split(key, 3)

    # Small MNIST-like shapes: 8 samples, 10 classes; outputs = (features, log_probs).
    N, C = 8, 10
    features = jax.random.normal(k_feat, (N, 32), dtype=jnp.float32)
    logits = jax.random.normal(k_logit, (N, C), dtype=jnp.float32)
    log_probs = jax.nn.log_softmax(logits, axis=-1)
    outputs = (features, log_probs)
    targets = jax.random.randint(k_tgt, (N,), 0, C, dtype=jnp.int32)

    loss = my_loss(outputs, targets)
    jax.block_until_ready(loss)
    ref = -jnp.mean(log_probs[jnp.arange(N), targets])
    assert jnp.allclose(loss, ref, atol=1e-6), (loss, ref)

    # Exercise the tiled + padded path (multiple grid steps, N not a tile multiple).
    N2, C2 = 300, 16
    k1, k2 = jax.random.split(key)
    lp2 = jax.nn.log_softmax(jax.random.normal(k1, (N2, C2), dtype=jnp.float32), axis=-1)
    tg2 = jax.random.randint(k2, (N2,), 0, C2, dtype=jnp.int32)
    loss2 = my_loss((None, lp2), tg2, tile_n=128)
    jax.block_until_ready(loss2)
    ref2 = -jnp.mean(lp2[jnp.arange(N2), tg2])
    assert jnp.allclose(loss2, ref2, atol=1e-5), (loss2, ref2)

    # Exercise the in-kernel cast path (bf16 log-probs stay bf16 in HBM).
    loss3 = my_loss((None, lp2.astype(jnp.bfloat16)), tg2, tile_n=128)
    jax.block_until_ready(loss3)
    assert jnp.allclose(loss3, ref2, atol=3e-2), (loss3, ref2)

    print("KERNEL_OK")
</pallas_src>

<mosaic_0001>
module attributes {stable_mosaic.version = 11 : i64} {
  func.func @_nll_loss_kernel(%arg0: i32, %arg1: memref<8x10xf32, #tpu.memory_space<vmem>>, %arg2: memref<8x1xi32, #tpu.memory_space<vmem>>, %arg3: memref<1x1xf32, #tpu.memory_space<vmem>>) attributes {dimension_semantics = [#tpu.dimension_semantics<arbitrary>], iteration_bounds = array<i64: 1>, scalar_prefetch = 0 : i64, scratch_operands = 0 : i64, tpu.core_type = #tpu.core_type<tc>, window_params = [{transform_indices = @transform_0, window_bounds = array<i64: 8, 10>}, {transform_indices = @transform_1, window_bounds = array<i64: 8, 1>}, {pipeline_mode = #tpu.pipeline_mode<synchronous>, transform_indices = @transform_2, window_bounds = array<i64: 1, 1>}]} {
    %c0_i32 = arith.constant 0 : i32
    %0 = arith.cmpi eq, %arg0, %c0_i32 : i32
    %1 = arith.extui %0 : i1 to i32
    %c0_i32_0 = arith.constant 0 : i32
    %2 = arith.cmpi ne, %1, %c0_i32_0 : i32
    scf.if %2 {
      %cst_11 = arith.constant 0.000000e+00 : f32
      %21 = vector.broadcast %cst_11 : f32 to vector<1x1xf32>
      %c0_12 = arith.constant 0 : index
      %c0_13 = arith.constant 0 : index
      %22 = vector.load %arg3[%c0_12, %c0_13] : memref<1x1xf32, #tpu.memory_space<vmem>>, vector<1x1xf32>
      tpu.vector_store %arg3[%c0_12, %c0_13], %21 {strides = array<i32>} : memref<1x1xf32, #tpu.memory_space<vmem>>, vector<1x1xf32>,
    } else {
    }
    %c0 = arith.constant 0 : index
    %c0_1 = arith.constant 0 : index
    %3 = vector.load %arg1[%c0, %c0_1] : memref<8x10xf32, #tpu.memory_space<vmem>>, vector<8x10xf32>
    %c0_2 = arith.constant 0 : index
    %c0_3 = arith.constant 0 : index
    %4 = vector.load %arg2[%c0_2, %c0_3] : memref<8x1xi32, #tpu.memory_space<vmem>>, vector<8x1xi32>
    %5 = tpu.iota {dimensions = array<i32: 1>} : vector<8x10xi32>
    %6 = vector.broadcast %4 : vector<8x1xi32> to vector<8x10xi32>
    %7 = arith.cmpi eq, %5, %6 : vector<8x10xi32>
    %cst = arith.constant 0.000000e+00 : f32
    %8 = vector.broadcast %cst : f32 to vector<8x10xf32>
    %9 = arith.select %7, %3, %8 : vector<8x10xi1>, vector<8x10xf32>
    %c0_4 = arith.constant 0 : index
    %c0_5 = arith.constant 0 : index
    %10 = vector.load %arg3[%c0_4, %c0_5] : memref<1x1xf32, #tpu.memory_space<vmem>>, vector<1x1xf32>
    %11 = vector.shape_cast %9 : vector<8x10xf32> to vector<1x8x10xf32>
    %cst_6 = arith.constant dense<0.000000e+00> : vector<1xf32>
    %12 = vector.multi_reduction <add>, %11, %cst_6 [1, 2] : vector<1x8x10xf32> to vector<1xf32>
    %13 = vector.shape_cast %12 : vector<1xf32> to vector<1x1x1xf32>
    %14 = vector.extract %13[0, 0, 0] : f32 from vector<1x1x1xf32>
    %15 = vector.broadcast %14 : f32 to vector<1x1xf32>
    %16 = arith.addf %10, %15 : vector<1x1xf32>
    %c0_7 = arith.constant 0 : index
    %c0_8 = arith.constant 0 : index
    %17 = vector.load %arg3[%c0_7, %c0_8] : memref<1x1xf32, #tpu.memory_space<vmem>>, vector<1x1xf32>
    tpu.vector_store %arg3[%c0_7, %c0_8], %16 {strides = array<i32>} : memref<1x1xf32, #tpu.memory_space<vmem>>, vector<1x1xf32>,
    %c0_i32_9 = arith.constant 0 : i32
    %18 = arith.cmpi eq, %arg0, %c0_i32_9 : i32
    %19 = arith.extui %18 : i1 to i32
    %c0_i32_10 = arith.constant 0 : i32
    %20 = arith.cmpi ne, %19, %c0_i32_10 : i32
    scf.if %20 {
      %c0_11 = arith.constant 0 : index
      %c0_12 = arith.constant 0 : index
      %21 = vector.load %arg3[%c0_11, %c0_12] : memref<1x1xf32, #tpu.memory_space<vmem>>, vector<1x1xf32>
      %cst_13 = arith.constant -1.250000e-01 : f32
      %22 = vector.broadcast %cst_13 : f32 to vector<1x1xf32>
      %23 = arith.mulf %21, %22 : vector<1x1xf32>
      %c0_14 = arith.constant 0 : index
      %c0_15 = arith.constant 0 : index
      %24 = vector.load %arg3[%c0_14, %c0_15] : memref<1x1xf32, #tpu.memory_space<vmem>>, vector<1x1xf32>
      tpu.vector_store %arg3[%c0_14, %c0_15], %23 {strides = array<i32>} : memref<1x1xf32, #tpu.memory_space<vmem>>, vector<1x1xf32>,
    } else {
    }
    return
  }
  func.func @transform_0(%arg0: i32) -> (i32, i32) {
    %c0_i32 = arith.constant 0 : i32
    %c0_i32_0 = arith.constant 0 : i32
    return %arg0, %c0_i32 : i32, i32
  }
  func.func @transform_1(%arg0: i32) -> (i32, i32) {
    %c0_i32 = arith.constant 0 : i32
    %c0_i32_0 = arith.constant 0 : i32
    return %arg0, %c0_i32 : i32, i32
  }
  func.func @transform_2(%arg0: i32) -> (i32, i32) {
    %c0_i32 = arith.constant 0 : i32
    %c0_i32_0 = arith.constant 0 : i32
    %c0_i32_1 = arith.constant 0 : i32
    return %c0_i32, %c0_i32_0 : i32, i32
  }
}

</mosaic_0001>

<llo_original>
// kernel: tpu_custom_call.1
$region0: #{tpu_custom_call.1}
  #allocation0 [shape = 'u32[]', space=smem, size = 0x4, offset = 0x4, fixed_abs, tag = 'smem constant byte address 0x4 - core index']
  #allocation1 [shape = 'u32[144,128]{1,0:T(1,128)}', space=vmem, size = 0x12000, scoped, tag = 'internal scratch']
  %s0 = inlined_call_operand.vmem [shape: f32[8,10], index: 0, kind: input, shape index: {}]
  %s1 = inlined_call_operand.vmem [shape: s32[8,1], index: 1, kind: input, shape index: {}]
  %s2 = inlined_call_operand.hbm [shape: f32[1,1], index: 2, kind: output, shape index: {}]
  %s3 = sld [smem:[#allocation0]]
  $region26: #{tpu_custom_call.1} parent=0
    _
  %s5 = ssub.s32 1, %s3
  %s6 = scalar_select 0, %s5, %s3
  $region1: #{tpu_custom_call.1} parent=0
    #allocation2 [shape = 'u8[512]{0}', space=vmem, size = 0x400, scoped, tag = 'output window, operand 0, single buffered']
    #allocation3 [shape = 's32[1]{0}', space=sflag, size = 0x4, scoped, tag = 'scoped memory for tpu_custom_call.1']
    %7 = vsyncpa [#allocation3], 0
    // Predicated region
    $region2: #{tpu_custom_call.1} parent=1 // pred_check
      _
    $region3: #{tpu_custom_call.1} parent=1 // pred_check_branch
      %9 = sbr.rel (0) target = $region5
    $region4: #{tpu_custom_call.1} parent=1 // pred_region
      _
    $region5: #{tpu_custom_call.1} parent=1 // pred_fallthru
      _
    // Predicated region
    $region6: #{tpu_custom_call.1} parent=1 // pred_check
      _
    $region7: #{tpu_custom_call.1} parent=1 // pred_check_branch
      %11 = sbr.rel (0) target = $region9
    $region8: #{tpu_custom_call.1} parent=1 // pred_region
      _
    $region9: #{tpu_custom_call.1} parent=1 // pred_fallthru
      _
    %p12 = scmp.eq.s32.totalorder 0, 0
    // Predicated region
    $region10: #{tpu_custom_call.1} parent=1 // pred_check
      %p13 = pneg %p12
    $region11: #{tpu_custom_call.1} parent=1 // pred_check_branch
      %15 = sbr.rel (%p13) target = $region13
    $region12: #{tpu_custom_call.1} parent=1 // pred_region
      %vm16 = vcmask 0
      %17 = vst.msk [vmem:[#allocation2] sm:$0x1] %vm16, 0.0
    $region13: #{tpu_custom_call.1} parent=1 // pred_fallthru
      _
    %v18 = vld [vmem:[%s0] sm:$0xff]
    %v19 = vld [vmem:[%s1] sm:$0xff]
    %v20 = vlaneseq
    %v21 = vand.u32 %v20, 127
    %22 = vset.pattern.permute.xlu0 0
    %23 = vperm.xlu0 %22, %v19
    %v24 = vpop.permute.xlu0 %23
    %vm25 = vcmp.eq.s32.totalorder %v21, %v24
    %v26 = vsel %vm25, %v18, 0.0
    %v27 = vld [vmem:[#allocation2] sm:$0x1]
    %vm28 = vcmask 80896
    %v29 = vsel %vm28, %v26, 0.0
    %30 = vadd.xlane.f32.xlu0 %v29
    %v31 = vpop.xlane.xlu0 %30
    %v32 = vrot.slane %v31, 4
    %v33 = vadd.f32 %v31, %v32
    %v34 = vrot.slane %v33, 2
    %v35 = vadd.f32 %v33, %v34
    %v36 = vrot.slane %v35, 1
    %v37 = vadd.f32 %v35, %v36
    %s38 = vtos %v37
    %v39 = vstv %s38
    %v40 = vadd.f32 %v27, %v39
    %vm41 = vcmask 0
    %42 = vst.msk [vmem:[#allocation2] sm:$0x1] %vm41, %v40
    // Predicated region
    $region14: #{tpu_custom_call.1} parent=1 // pred_check
      %p43 = pneg %p12
    $region15: #{tpu_custom_call.1} parent=1 // pred_check_branch
      %45 = sbr.rel (%p43) target = $region17
    $region16: #{tpu_custom_call.1} parent=1 // pred_region
      %v46 = vld [vmem:[#allocation2] sm:$0x1]
      %v47 = vmul.f32 %v46, -0.125
      %48 = vst.msk [vmem:[#allocation2] sm:$0x1] %vm41, %v47
    $region17: #{tpu_custom_call.1} parent=1 // pred_fallthru
      _
    // Predicated region
    $region18: #{tpu_custom_call.1} parent=1 // pred_check
      _
    $region19: #{tpu_custom_call.1} parent=1 // pred_check_branch
      %50 = sbr.rel (0) target = $region21
    $region20: #{tpu_custom_call.1} parent=1 // pred_region
      %s52 = ssub.s32 16, 16
      %53 = vsyncadd [#allocation3], %s52
      %s55 = sshll.u32 [#allocation2], 4
      %s56 = int_to_ptr.vmem [resolvable:$true] %s55
      %58 = dma.vmem_to_hbm [thread:$0]  %s56, 16, %s2, [#allocation3]
    $region21: #{tpu_custom_call.1} parent=1 // pred_fallthru
      _
    // Predicated region
    $region22: #{tpu_custom_call.1} parent=1 // pred_check
      _
    $region23: #{tpu_custom_call.1} parent=1 // pred_check_branch
      %60 = sbr.rel (0) target = $region25
    $region24: #{tpu_custom_call.1} parent=1 // pred_region
      %61 = dma.done [#allocation3], 16
    $region25: #{tpu_custom_call.1} parent=1 // pred_fallthru
      _
    %62 = vsyncpa [#allocation3], 1

</llo_original>
